<compile_context>
chip_gen: v6e
topology: v6e:2x2x1
jax: 0.10.0
libtpu: 0.0.40
codegen_flags: <defaults>
</compile_context>

<pallas_src>
import functools

import jax
import jax.numpy as jnp
from jax.experimental import pallas as pl
from jax.experimental.pallas import tpu as pltpu


def _gce_kernel(im_ref, cv_ref, w1_ref, b1_ref, w2_ref, b2_ref, out_ref):
    # im_ref:  (im_chan, TILE)   guidance-feature columns (channels on sublanes)
    # cv_ref:  (cv_chan, TILE)   cost-volume columns
    # w1_ref:  (im_chan, im_chan)  conv1 weight (C_out, C_in), BN scale folded, im.dtype
    # b1_ref:  (im_chan, 1)        folded BN shift (f32)
    # w2_ref:  (cv_chan, im_chan)  conv2 weight (C_out, C_in), im.dtype
    # b2_ref:  (cv_chan, 1)        conv2 bias (f32)
    # out_ref: (cv_chan, TILE)
    #
    # NOTE: every op below is column (lane) independent; ragged-tail
    # correctness relies on that.  Do not introduce cross-lane reductions.
    x = im_ref[...]                                     # native dtype, no upcast

    # 1x1 conv #1 (BN scale folded into rows of W1) + shift -> ReLU (f32).
    h = jnp.dot(w1_ref[...], x,
                preferred_element_type=jnp.float32,
                precision=jax.lax.Precision.HIGHEST)
    h = jnp.maximum(h + b1_ref[...], 0.0)

    # 1x1 conv #2 (with bias) -> attention (f32 accumulate).
    att = jnp.dot(w2_ref[...], h.astype(w2_ref.dtype),
                  preferred_element_type=jnp.float32,
                  precision=jax.lax.Precision.HIGHEST)
    att = att + b2_ref[...]

    # Excitation: multiply in f32, single cast at the store.
    out_ref[...] = (att * cv_ref[...].astype(jnp.float32)).astype(out_ref.dtype)


def _choose_tile(hw, im_chan, cv_chan, im_bytes, cv_bytes, out_bytes, budget_bytes):
    """Pick a lane tile from a VMEM budget, then balance the ragged tail."""
    # Double-buffered im/cv/out blocks + f32 intermediates (h, att) per lane.
    per_lane = (2 * (im_chan * im_bytes + cv_chan * cv_bytes + cv_chan * out_bytes)
                + (im_chan + cv_chan) * 4)
    tile_max = max(128, (budget_bytes // per_lane) // 128 * 128)
    if tile_max >= hw:
        return hw, 1, per_lane                    # whole (C, HW) slab per batch
    n_tiles = -(-hw // tile_max)                  # cdiv
    tile = -(-(-(-hw // n_tiles)) // 128) * 128   # round_up(cdiv(hw, n_tiles), 128)
    tile = min(tile, tile_max)
    n_tiles = -(-hw // tile)
    return tile, n_tiles, per_lane


@functools.partial(jax.jit, static_argnames=("vmem_budget_bytes",))
def guided_cost_volume_excitation(cv, im, params, *, vmem_budget_bytes=32 * 1024 * 1024):
    """cv: [B, cv_chan, H, W], im: [B, im_chan, H, W]  (NCHW, like PyTorch)."""
    w1, gamma, beta, mean, var, w2, b2 = (
        params["w1"], params["bn_gamma"], params["bn_beta"],
        params["bn_mean"], params["bn_var"], params["w2"], params["b2"])

    B, cv_chan, H, W = cv.shape
    im_chan = im.shape[1]
    HW = H * W
    eps = 1e-5  # inference-mode BN; fold is only valid in eval mode.

    # Fold BatchNorm (inference) into conv1: scale into the weight rows,
    # shift becomes a per-channel bias.  Weights are kept in im's dtype so a
    # bf16 guidance block feeds the MXU without an f32 upcast pass.
    scale = gamma / jnp.sqrt(var + eps)                            # (im_chan,)
    shift = beta - mean * scale                                    # (im_chan,)
    w1s = (w1[:, :, 0, 0] * scale[:, None]).astype(im.dtype)       # (im, im)
    b1v = shift.reshape(im_chan, 1).astype(jnp.float32)            # (im, 1)
    w2m = w2[:, :, 0, 0].astype(im.dtype)                          # (cv, im)
    b2v = b2.reshape(cv_chan, 1).astype(jnp.float32)               # (cv, 1)

    # NCHW -> (B, C, H*W): pure reshape, no transpose / extra HBM traffic.
    im3 = im.reshape(B, im_chan, HW)
    cv3 = cv.reshape(B, cv_chan, HW)

    tile, n_tiles, per_lane = _choose_tile(
        HW, im_chan, cv_chan,
        im.dtype.itemsize, cv.dtype.itemsize, cv.dtype.itemsize,
        vmem_budget_bytes)

    # Scoped-VMEM limit sized to the tile (+ headroom), capped for v7x (64 MiB).
    vmem_limit = int(min(max(per_lane * tile * 5 // 4 + (1 << 20),
                             32 * 1024 * 1024),
                         48 * 1024 * 1024))

    out3 = pl.pallas_call(
        _gce_kernel,
        out_shape=jax.ShapeDtypeStruct((B, cv_chan, HW), cv.dtype),
        grid_spec=pltpu.PrefetchScalarGridSpec(
            num_scalar_prefetch=0,
            grid=(B, n_tiles),
            in_specs=[
                # Leading batch dim is squeezed out of the kernel refs.
                pl.BlockSpec((None, im_chan, tile), lambda b, t: (b, 0, t)),
                pl.BlockSpec((None, cv_chan, tile), lambda b, t: (b, 0, t)),
                pl.BlockSpec((im_chan, im_chan), lambda b, t: (0, 0)),  # w1s
                pl.BlockSpec((im_chan, 1), lambda b, t: (0, 0)),        # b1
                pl.BlockSpec((cv_chan, im_chan), lambda b, t: (0, 0)),  # w2
                pl.BlockSpec((cv_chan, 1), lambda b, t: (0, 0)),        # b2
            ],
            out_specs=pl.BlockSpec((None, cv_chan, tile), lambda b, t: (b, 0, t)),
        ),
        compiler_params=pltpu.CompilerParams(
            dimension_semantics=("parallel", "parallel"),
            vmem_limit_bytes=vmem_limit),
    )(im3, cv3, w1s, b1v, w2m, b2v)

    return out3.reshape(B, cv_chan, H, W)


def _reference(cv, im, params):
    """Pure-JAX reference of the PyTorch forward (NCHW, inference BN)."""
    eps = 1e-5
    w1 = params["w1"][:, :, 0, 0]          # (im, im)  [out, in]
    w2 = params["w2"][:, :, 0, 0]          # (cv, im)  [out, in]
    h = jnp.einsum("oc,bchw->bohw", w1, im)
    scale = params["bn_gamma"] / jnp.sqrt(params["bn_var"] + eps)
    shift = params["bn_beta"] - params["bn_mean"] * scale
    h = h * scale[None, :, None, None] + shift[None, :, None, None]
    h = jnp.maximum(h, 0.0)
    att = jnp.einsum("oc,bchw->bohw", w2, h) + params["b2"][None, :, None, None]
    return att * cv


def make_params(key, cv_chan, im_chan):
    k1, k2, k3, k4, k5 = jax.random.split(key, 5)
    return {
        "w1": 0.1 * jax.random.normal(k1, (im_chan, im_chan, 1, 1), jnp.float32),
        "bn_gamma": 1.0 + 0.05 * jax.random.normal(k2, (im_chan,), jnp.float32),
        "bn_beta": 0.05 * jax.random.normal(k3, (im_chan,), jnp.float32),
        "bn_mean": jnp.zeros((im_chan,), jnp.float32),
        "bn_var": jnp.ones((im_chan,), jnp.float32),
        "w2": 0.1 * jax.random.normal(k4, (cv_chan, im_chan, 1, 1), jnp.float32),
        "b2": 0.05 * jax.random.normal(k5, (cv_chan,), jnp.float32),
    }


if __name__ == "__main__":
    key = jax.random.PRNGKey(0)
    kcv, kim, kp = jax.random.split(key, 3)

    B, cv_chan, im_chan, H, W = 2, 16, 8, 16, 16
    cv = jax.random.normal(kcv, (B, cv_chan, H, W), jnp.float32)
    im = jax.random.normal(kim, (B, im_chan, H, W), jnp.float32)
    params = make_params(kp, cv_chan, im_chan)

    out = guided_cost_volume_excitation(cv, im, params)
    out = jax.block_until_ready(out)

    ref = _reference(cv, im, params)
    assert out.shape == (B, cv_chan, H, W)
    assert jnp.allclose(out, ref, atol=1e-4, rtol=1e-4), "mismatch vs reference"

    print("KERNEL_OK")
</pallas_src>

<mosaic_0001>
module attributes {stable_mosaic.version = 11 : i64} {
  func.func @_gce_kernel(%arg0: i32, %arg1: i32, %arg2: memref<1x8x256xf32, #tpu.memory_space<vmem>>, %arg3: memref<1x16x256xf32, #tpu.memory_space<vmem>>, %arg4: memref<8x8xf32, #tpu.memory_space<vmem>>, %arg5: memref<8x1xf32, #tpu.memory_space<vmem>>, %arg6: memref<16x8xf32, #tpu.memory_space<vmem>>, %arg7: memref<16x1xf32, #tpu.memory_space<vmem>>, %arg8: memref<1x16x256xf32, #tpu.memory_space<vmem>>) attributes {dimension_semantics = [#tpu.dimension_semantics<parallel>, #tpu.dimension_semantics<parallel>], iteration_bounds = array<i64: 2, 1>, scalar_prefetch = 0 : i64, scratch_operands = 0 : i64, tpu.core_type = #tpu.core_type<tc>, window_params = [{transform_indices = @transform_0, window_bounds = array<i64: 1, 8, 256>}, {transform_indices = @transform_1, window_bounds = array<i64: 1, 16, 256>}, {pipeline_mode = #tpu.pipeline_mode<synchronous>, transform_indices = @transform_2, window_bounds = array<i64: 8, 8>}, {pipeline_mode = #tpu.pipeline_mode<synchronous>, transform_indices = @transform_3, window_bounds = array<i64: 8, 1>}, {pipeline_mode = #tpu.pipeline_mode<synchronous>, transform_indices = @transform_4, window_bounds = array<i64: 16, 8>}, {pipeline_mode = #tpu.pipeline_mode<synchronous>, transform_indices = @transform_5, window_bounds = array<i64: 16, 1>}, {transform_indices = @transform_6, window_bounds = array<i64: 1, 16, 256>}]} {
    %c0 = arith.constant 0 : index
    %c0_0 = arith.constant 0 : index
    %c0_1 = arith.constant 0 : index
    %0 = vector.load %arg2[%c0, %c0_0, %c0_1] : memref<1x8x256xf32, #tpu.memory_space<vmem>>, vector<1x8x256xf32>
    %1 = vector.shape_cast %0 : vector<1x8x256xf32> to vector<8x256xf32>
    %c0_2 = arith.constant 0 : index
    %c0_3 = arith.constant 0 : index
    %2 = vector.load %arg4[%c0_2, %c0_3] : memref<8x8xf32, #tpu.memory_space<vmem>>, vector<8x8xf32>
    %cst = arith.constant dense<0.000000e+00> : vector<8x256xf32>
    %3 = tpu.matmul %2, %1, %cst {dimension_numbers = #tpu.dot_dimension_numbers<[1], [0], [0], [1], [0, 0, 1, 1], [], []>, precision = #tpu.contract_precision<fp32>} : vector<8x8xf32>, vector<8x256xf32>, vector<8x256xf32> -> vector<8x256xf32>
    %c0_4 = arith.constant 0 : index
    %c0_5 = arith.constant 0 : index
    %4 = vector.load %arg5[%c0_4, %c0_5] : memref<8x1xf32, #tpu.memory_space<vmem>>, vector<8x1xf32>
    %5 = vector.broadcast %4 : vector<8x1xf32> to vector<8x256xf32>
    %6 = arith.addf %3, %5 : vector<8x256xf32>
    %cst_6 = arith.constant 0.000000e+00 : f32
    %7 = vector.broadcast %cst_6 : f32 to vector<8x256xf32>
    %8 = arith.maximumf %6, %7 : vector<8x256xf32>
    %c0_7 = arith.constant 0 : index
    %c0_8 = arith.constant 0 : index
    %9 = vector.load %arg6[%c0_7, %c0_8] : memref<16x8xf32, #tpu.memory_space<vmem>>, vector<16x8xf32>
    %cst_9 = arith.constant dense<0.000000e+00> : vector<16x256xf32>
    %10 = tpu.matmul %9, %8, %cst_9 {dimension_numbers = #tpu.dot_dimension_numbers<[1], [0], [0], [1], [0, 0, 1, 1], [], []>, precision = #tpu.contract_precision<fp32>} : vector<16x8xf32>, vector<8x256xf32>, vector<16x256xf32> -> vector<16x256xf32>
    %c0_10 = arith.constant 0 : index
    %c0_11 = arith.constant 0 : index
    %11 = vector.load %arg7[%c0_10, %c0_11] : memref<16x1xf32, #tpu.memory_space<vmem>>, vector<16x1xf32>
    %12 = vector.broadcast %11 : vector<16x1xf32> to vector<16x256xf32>
    %13 = arith.addf %10, %12 : vector<16x256xf32>
    %c0_12 = arith.constant 0 : index
    %c0_13 = arith.constant 0 : index
    %c0_14 = arith.constant 0 : index
    %14 = vector.load %arg3[%c0_12, %c0_13, %c0_14] : memref<1x16x256xf32, #tpu.memory_space<vmem>>, vector<1x16x256xf32>
    %15 = vector.shape_cast %14 : vector<1x16x256xf32> to vector<16x256xf32>
    %16 = arith.mulf %13, %15 : vector<16x256xf32>
    %c0_15 = arith.constant 0 : index
    %c0_16 = arith.constant 0 : index
    %c0_17 = arith.constant 0 : index
    %17 = vector.load %arg8[%c0_15, %c0_16, %c0_17] : memref<1x16x256xf32, #tpu.memory_space<vmem>>, vector<1x16x256xf32>
    %18 = vector.shape_cast %17 : vector<1x16x256xf32> to vector<16x256xf32>
    %19 = vector.shape_cast %16 : vector<16x256xf32> to vector<1x16x256xf32>
    tpu.vector_store %arg8[%c0_15, %c0_16, %c0_17], %19 {strides = array<i32>} : memref<1x16x256xf32, #tpu.memory_space<vmem>>, vector<1x16x256xf32>,
    return
  }
  func.func @transform_0(%arg0: i32, %arg1: i32) -> (i32, i32, i32) {
    %c0_i32 = arith.constant 0 : i32
    %c0_i32_0 = arith.constant 0 : i32
    return %arg0, %c0_i32, %arg1 : i32, i32, i32
  }
  func.func @transform_1(%arg0: i32, %arg1: i32) -> (i32, i32, i32) {
    %c0_i32 = arith.constant 0 : i32
    %c0_i32_0 = arith.constant 0 : i32
    return %arg0, %c0_i32, %arg1 : i32, i32, i32
  }
  func.func @transform_2(%arg0: i32, %arg1: i32) -> (i32, i32) {
    %c0_i32 = arith.constant 0 : i32
    %c0_i32_0 = arith.constant 0 : i32
    %c0_i32_1 = arith.constant 0 : i32
    return %c0_i32, %c0_i32_0 : i32, i32
  }
  func.func @transform_3(%arg0: i32, %arg1: i32) -> (i32, i32) {
    %c0_i32 = arith.constant 0 : i32
    %c0_i32_0 = arith.constant 0 : i32
    %c0_i32_1 = arith.constant 0 : i32
    return %c0_i32, %c0_i32_0 : i32, i32
  }
  func.func @transform_4(%arg0: i32, %arg1: i32) -> (i32, i32) {
    %c0_i32 = arith.constant 0 : i32
    %c0_i32_0 = arith.constant 0 : i32
    %c0_i32_1 = arith.constant 0 : i32
    return %c0_i32, %c0_i32_0 : i32, i32
  }
  func.func @transform_5(%arg0: i32, %arg1: i32) -> (i32, i32) {
    %c0_i32 = arith.constant 0 : i32
    %c0_i32_0 = arith.constant 0 : i32
    %c0_i32_1 = arith.constant 0 : i32
    return %c0_i32, %c0_i32_0 : i32, i32
  }
  func.func @transform_6(%arg0: i32, %arg1: i32) -> (i32, i32, i32) {
    %c0_i32 = arith.constant 0 : i32
    %c0_i32_0 = arith.constant 0 : i32
    return %arg0, %c0_i32, %arg1 : i32, i32, i32
  }
}

</mosaic_0001>

<llo_original>
// kernel: guided_cost_volume_excitation.1
$region0: #{guided_cost_volume_excitation.1}
  #allocation0 [shape = 'u32[]', space=smem, size = 0x4, offset = 0x4, fixed_abs, tag = 'smem constant byte address 0x4 - core index']
  #allocation1 [shape = 'u32[144,128]{1,0:T(1,128)}', space=vmem, size = 0x12000, scoped, tag = 'internal scratch']
  %s0 = inlined_call_operand.vmem [shape: f32[2,8,256], index: 0, kind: input, shape index: {}]
  %s1 = inlined_call_operand.vmem [shape: f32[2,16,256], index: 1, kind: input, shape index: {}]
  %s2 = inlined_call_operand.vmem [shape: f32[8,8], index: 2, kind: input, shape index: {}]
  %s3 = inlined_call_operand.vmem [shape: f32[8,1], index: 3, kind: input, shape index: {}]
  %s4 = inlined_call_operand.vmem [shape: f32[16,8], index: 4, kind: input, shape index: {}]
  %s5 = inlined_call_operand.vmem [shape: f32[16,1], index: 5, kind: input, shape index: {}]
  %s6 = inlined_call_operand.vmem [shape: f32[2,16,256], index: 6, kind: output, shape index: {}]
  %s7 = sld [smem:[#allocation0]]
  $region57: #{guided_cost_volume_excitation.1} parent=0
    _
  %s9 = ssub.s32 1, %s7
  %s10 = scalar_select 0, %s9, %s7
  loop: start=0, step=1, limit=4
  $region2: #{guided_cost_volume_excitation.1} parent=0 // loop_pre_header
    _
  $region3: #{guided_cost_volume_excitation.1} parent=0 // loop_header
    %s12 = sphi 0, %s16
    %p13 = scmp.ge.s32.totalorder %s12, 4
    %s19 = sphi 0, %s31
    %s20 = sphi 0, %s27
    %s21 = sphi 0, %s19
    %s22 = sphi 0, %s20
    %s23 = sphi 0, %s21
    %s24 = sphi 0, %s22
    %s36 = sphi 0, %s38
    %s39 = sphi 0, %s36
    %s40 = sphi 0, %s39
    %s56 = sphi 0, %s40
    %s64 = sphi 0, %s66
    %s67 = sphi 0, %s64
    %s68 = sphi 0, %s67
    %s84 = sphi 0, %s68
    %s88 = sphi 0, %s88
    %s90 = sphi 0, %s88
    %s91 = sphi 0, %s90
    %s105 = sphi 0, %s91
    %s109 = sphi 0, %s109
    %s111 = sphi 0, %s109
    %s112 = sphi 0, %s111
    %s126 = sphi 0, %s112
    %s130 = sphi 0, %s130
    %s132 = sphi 0, %s130
    %s133 = sphi 0, %s132
    %s147 = sphi 0, %s133
    %s151 = sphi 0, %s151
    %s153 = sphi 0, %s151
    %s154 = sphi 0, %s153
    %s168 = sphi 0, %s154
    %s176 = sphi 0, %s178
    %s179 = sphi 0, %s176
    %s180 = sphi 0, %s179
    %s196 = sphi 0, %s180
  $region4: #{guided_cost_volume_excitation.1} parent=0 // loop_header_branch
    %15 = sbr.rel (%p13) target = $region8
  $region5: #{guided_cost_volume_excitation.1} parent=0 // loop_body
    %s17 = ssub.s32 %s12, 1
    %s18 = ssub.s32 %s12, 2
    %s25 = sadd.s32 1, %s20
    %p26 = scmp.ge.s32.totalorder %s25, 1
    %s27 = scalar_select %p26, 0, %s25
    %s28 = sadd.s32 1, %s19
    %s29 = scalar_select %p26, %s28, %s19
    %p30 = scmp.ge.s32.totalorder %s29, 2
    %s31 = scalar_select %p30, 0, %s29
    %s32 = ssub.s32 %s19, %s31
    %s33 = ssub.s32 %s20, %s27
    %s34 = sor.u32 %s32, %s33
    %p35 = scmp.eq.s32.totalorder %s34, 0
    %s37 = sadd.s32 %s36, 1
    %s38 = scalar_select %p35, %s36, %s37
    %p41 = pneg %p35
    %p42 = scmp.eq.s32.totalorder %s12, 1
    %p43 = por %p41, %p42
    %p44 = scmp.ne.s32.totalorder %s36, %s39
    %p45 = scmp.eq.s32.totalorder %s12, 0
    %p46 = por %p44, %p45
    %p47 = scmp.ne.s32.totalorder %s36, %s39
    %p48 = scmp.eq.s32.totalorder %s17, 1
    %p49 = por %p47, %p48
    %p50 = scmp.ne.s32.totalorder %s39, %s40
    %p51 = scmp.eq.s32.totalorder %s17, 0
    %p52 = por %p50, %p51
    %p53 = scmp.ne.s32.totalorder %s39, %s40
    %p54 = scmp.eq.s32.totalorder %s18, 1
    %p55 = por %p53, %p54
    %p57 = scmp.ne.s32.totalorder %s40, %s56
    %p58 = scmp.eq.s32.totalorder %s18, 0
    %p59 = por %p57, %p58
    %s60 = ssub.s32 %s19, %s31
    %s61 = ssub.s32 %s20, %s27
    %s62 = sor.u32 %s60, %s61
    %p63 = scmp.eq.s32.totalorder %s62, 0
    %s65 = sadd.s32 %s64, 1
    %s66 = scalar_select %p63, %s64, %s65
    %p69 = pneg %p63
    %p70 = scmp.eq.s32.totalorder %s12, 1
    %p71 = por %p69, %p70
    %p72 = scmp.ne.s32.totalorder %s64, %s67
    %p73 = scmp.eq.s32.totalorder %s12, 0
    %p74 = por %p72, %p73
    %p75 = scmp.ne.s32.totalorder %s64, %s67
    %p76 = scmp.eq.s32.totalorder %s17, 1
    %p77 = por %p75, %p76
    %p78 = scmp.ne.s32.totalorder %s67, %s68
    %p79 = scmp.eq.s32.totalorder %s17, 0
    %p80 = por %p78, %p79
    %p81 = scmp.ne.s32.totalorder %s67, %s68
    %p82 = scmp.eq.s32.totalorder %s18, 1
    %p83 = por %p81, %p82
    %p85 = scmp.ne.s32.totalorder %s68, %s84
    %p86 = scmp.eq.s32.totalorder %s18, 0
    %p87 = por %p85, %p86
    %s89 = sadd.s32 %s88, 1
    %p92 = scmp.eq.s32.totalorder %s12, 1
    %p93 = scmp.ne.s32.totalorder %s88, %s90
    %p94 = scmp.eq.s32.totalorder %s12, 0
    %p95 = por %p93, %p94
    %p96 = scmp.ne.s32.totalorder %s88, %s90
    %p97 = scmp.eq.s32.totalorder %s17, 1
    %p98 = por %p96, %p97
    %p99 = scmp.ne.s32.totalorder %s90, %s91
    %p100 = scmp.eq.s32.totalorder %s17, 0
    %p101 = por %p99, %p100
    %p102 = scmp.ne.s32.totalorder %s90, %s91
    %p103 = scmp.eq.s32.totalorder %s18, 1
    %p104 = por %p102, %p103
    %p106 = scmp.ne.s32.totalorder %s91, %s105
    %p107 = scmp.eq.s32.totalorder %s18, 0
    %p108 = por %p106, %p107
    %s110 = sadd.s32 %s109, 1
    %p113 = scmp.eq.s32.totalorder %s12, 1
    %p114 = scmp.ne.s32.totalorder %s109, %s111
    %p115 = scmp.eq.s32.totalorder %s12, 0
    %p116 = por %p114, %p115
    %p117 = scmp.ne.s32.totalorder %s109, %s111
    %p118 = scmp.eq.s32.totalorder %s17, 1
    %p119 = por %p117, %p118
    %p120 = scmp.ne.s32.totalorder %s111, %s112
    %p121 = scmp.eq.s32.totalorder %s17, 0
    %p122 = por %p120, %p121
    %p123 = scmp.ne.s32.totalorder %s111, %s112
    %p124 = scmp.eq.s32.totalorder %s18, 1
    %p125 = por %p123, %p124
    %p127 = scmp.ne.s32.totalorder %s112, %s126
    %p128 = scmp.eq.s32.totalorder %s18, 0
    %p129 = por %p127, %p128
    %s131 = sadd.s32 %s130, 1
    %p134 = scmp.eq.s32.totalorder %s12, 1
    %p135 = scmp.ne.s32.totalorder %s130, %s132
    %p136 = scmp.eq.s32.totalorder %s12, 0
    %p137 = por %p135, %p136
    %p138 = scmp.ne.s32.totalorder %s130, %s132
    %p139 = scmp.eq.s32.totalorder %s17, 1
    %p140 = por %p138, %p139
    %p141 = scmp.ne.s32.totalorder %s132, %s133
    %p142 = scmp.eq.s32.totalorder %s17, 0
    %p143 = por %p141, %p142
    %p144 = scmp.ne.s32.totalorder %s132, %s133
    %p145 = scmp.eq.s32.totalorder %s18, 1
    %p146 = por %p144, %p145
    %p148 = scmp.ne.s32.totalorder %s133, %s147
    %p149 = scmp.eq.s32.totalorder %s18, 0
    %p150 = por %p148, %p149
    %s152 = sadd.s32 %s151, 1
    %p155 = scmp.eq.s32.totalorder %s12, 1
    %p156 = scmp.ne.s32.totalorder %s151, %s153
    %p157 = scmp.eq.s32.totalorder %s12, 0
    %p158 = por %p156, %p157
    %p159 = scmp.ne.s32.totalorder %s151, %s153
    %p160 = scmp.eq.s32.totalorder %s17, 1
    %p161 = por %p159, %p160
    %p162 = scmp.ne.s32.totalorder %s153, %s154
    %p163 = scmp.eq.s32.totalorder %s17, 0
    %p164 = por %p162, %p163
    %p165 = scmp.ne.s32.totalorder %s153, %s154
    %p166 = scmp.eq.s32.totalorder %s18, 1
    %p167 = por %p165, %p166
    %p169 = scmp.ne.s32.totalorder %s154, %s168
    %p170 = scmp.eq.s32.totalorder %s18, 0
    %p171 = por %p169, %p170
    %s172 = ssub.s32 %s19, %s31
    %s173 = ssub.s32 %s20, %s27
    %s174 = sor.u32 %s172, %s173
    %p175 = scmp.eq.s32.totalorder %s174, 0
    %s177 = sadd.s32 %s176, 1
    %s178 = scalar_select %p175, %s176, %s177
    %p181 = pneg %p175
    %p182 = scmp.eq.s32.totalorder %s12, 1
    %p183 = por %p181, %p182
    %p184 = scmp.ne.s32.totalorder %s176, %s179
    %p185 = scmp.eq.s32.totalorder %s12, 0
    %p186 = por %p184, %p185
    %p187 = scmp.ne.s32.totalorder %s176, %s179
    %p188 = scmp.eq.s32.totalorder %s17, 1
    %p189 = por %p187, %p188
    %p190 = scmp.ne.s32.totalorder %s179, %s180
    %p191 = scmp.eq.s32.totalorder %s17, 0
    %p192 = por %p190, %p191
    %p193 = scmp.ne.s32.totalorder %s179, %s180
    %p194 = scmp.eq.s32.totalorder %s18, 1
    %p195 = por %p193, %p194
    %p197 = scmp.ne.s32.totalorder %s180, %s196
    %p198 = scmp.eq.s32.totalorder %s18, 0
    %p199 = por %p197, %p198
    %p200 = scmp.le.s32.totalorder 1, %s12
    %p201 = scmp.lt.s32.totalorder %s12, 3
    %p202 = pnand %p200, %p201
    %p203 = pneg %p202
    // Predicated region
    $region9: #{guided_cost_volume_excitation.1} parent=5 // pred_check
      _
    $region10: #{guided_cost_volume_excitation.1} parent=5 // pred_check_branch
      %205 = sbr.rel (%p202) target = $region12
    $region11: #{guided_cost_volume_excitation.1} parent=5 // pred_region
      %s206 = ssub.s32 %s12, 1
      // Predicated region
      $region13: #{guided_cost_volume_excitation.1} parent=11 // pred_check
        %p207 = pneg %p101
      $region14: #{guided_cost_volume_excitation.1} parent=11 // pred_check_branch
        %209 = sbr.rel (%p207) target = $region16
      $region15: #{guided_cost_volume_excitation.1} parent=11 // pred_region
        _
      $region16: #{guided_cost_volume_excitation.1} parent=11 // pred_fallthru
        _
      // Predicated region
      $region17: #{guided_cost_volume_excitation.1} parent=11 // pred_check
        %p210 = pneg %p122
      $region18: #{guided_cost_volume_excitation.1} parent=11 // pred_check_branch
        %212 = sbr.rel (%p210) target = $region20
      $region19: #{guided_cost_volume_excitation.1} parent=11 // pred_region
        _
      $region20: #{guided_cost_volume_excitation.1} parent=11 // pred_fallthru
        _
      // Predicated region
      $region21: #{guided_cost_volume_excitation.1} parent=11 // pred_check
        %p213 = pneg %p143
      $region22: #{guided_cost_volume_excitation.1} parent=11 // pred_check_branch
        %215 = sbr.rel (%p213) target = $region24
      $region23: #{guided_cost_volume_excitation.1} parent=11 // pred_region
        _
      $region24: #{guided_cost_volume_excitation.1} parent=11 // pred_fallthru
        _
      // Predicated region
      $region25: #{guided_cost_volume_excitation.1} parent=11 // pred_check
        %p216 = pneg %p164
      $region26: #{guided_cost_volume_excitation.1} parent=11 // pred_check_branch
        %218 = sbr.rel (%p216) target = $region28
      $region27: #{guided_cost_volume_excitation.1} parent=11 // pred_region
        _
      $region28: #{guided_cost_volume_excitation.1} parent=11 // pred_fallthru
        _
    $region12: #{guided_cost_volume_excitation.1} parent=5 // pred_fallthru
      _
    %p219 = scmp.lt.s32.totalorder %s12, 2
    // Predicated region
    $region29: #{guided_cost_volume_excitation.1} parent=5 // pred_check
      %p220 = pneg %p219
    $region30: #{guided_cost_volume_excitation.1} parent=5 // pred_check_branch
      %222 = sbr.rel (%p220) target = $region32
    $region31: #{guided_cost_volume_excitation.1} parent=5 // pred_region
      // Predicated region
      $region33: #{guided_cost_volume_excitation.1} parent=31 // pred_check
        %p223 = pneg %p46
      $region34: #{guided_cost_volume_excitation.1} parent=31 // pred_check_branch
        %225 = sbr.rel (%p223) target = $region36
      $region35: #{guided_cost_volume_excitation.1} parent=31 // pred_region
        %s226 = smul.u32 2, %s20
        %p227 = scmp.lt.s32.totalorder %s19, 1
        %s228 = scalar_select %p227, %s19, 1
        %p229 = scmp.lt.s32.totalorder %s226, 1
        %s230 = scalar_select %p229, %s226, 1
        %s231 = smul.addr %s228, 2
        %s232 = sadd.s32 %s230, %s231
        %s233 = smul.addr %s232, 8
        %s234 = scalar_lea.vmem %s0, %s233
        %s235 = smul.u32 2, %s20
      $region36: #{guided_cost_volume_excitation.1} parent=31 // pred_fallthru
        _
      // Predicated region
      $region37: #{guided_cost_volume_excitation.1} parent=31 // pred_check
        %p236 = pneg %p74
      $region38: #{guided_cost_volume_excitation.1} parent=31 // pred_check_branch
        %238 = sbr.rel (%p236) target = $region40
      $region39: #{guided_cost_volume_excitation.1} parent=31 // pred_region
        %s239 = smul.u32 2, %s20
        %p240 = scmp.lt.s32.totalorder %s19, 1
        %s241 = scalar_select %p240, %s19, 1
        %p242 = scmp.lt.s32.totalorder %s239, 1
        %s243 = scalar_select %p242, %s239, 1
        %s244 = smul.addr %s241, 4
        %s245 = sadd.s32 %s243, %s244
        %s246 = smul.addr %s245, 8
        %s247 = scalar_lea.vmem %s1, %s246
        %s248 = smul.u32 2, %s20
      $region40: #{guided_cost_volume_excitation.1} parent=31 // pred_fallthru
        _
    $region32: #{guided_cost_volume_excitation.1} parent=5 // pred_fallthru
      _
    %p249 = scmp.le.s32.totalorder 1, %s12
    %p250 = scmp.lt.s32.totalorder %s12, 3
    %p251 = pnand %p249, %p250
    %p252 = pneg %p251
    // Predicated region
    $region41: #{guided_cost_volume_excitation.1} parent=5 // pred_check
      _
    $region42: #{guided_cost_volume_excitation.1} parent=5 // pred_check_branch
      %254 = sbr.rel (%p251) target = $region44
    $region43: #{guided_cost_volume_excitation.1} parent=5 // pred_region
      %s255 = ssub.s32 %s12, 1
      %s256 = smul.u32 2, %s22
      %p257 = scmp.lt.s32.totalorder %s21, 1
      %s258 = scalar_select %p257, %s21, 1
      %p259 = scmp.lt.s32.totalorder %s256, 1
      %s260 = scalar_select %p259, %s256, 1
      %s261 = smul.addr %s258, 2
      %s262 = sadd.s32 %s260, %s261
      %s263 = smul.addr %s262, 8
      %s264 = scalar_lea.vmem %s0, %s263
      %p265 = pneg %p52
      %p266 = pneg %p49
      %s267 = smul.u32 2, %s22
      %p268 = scmp.lt.s32.totalorder %s21, 1
      %s269 = scalar_select %p268, %s21, 1
      %p270 = scmp.lt.s32.totalorder %s267, 1
      %s271 = scalar_select %p270, %s267, 1
      %s272 = smul.addr %s269, 4
      %s273 = sadd.s32 %s271, %s272
      %s274 = smul.addr %s273, 8
      %s275 = scalar_lea.vmem %s1, %s274
      %p276 = pneg %p80
      %p277 = pneg %p77
      %p278 = pneg %p101
      %p279 = pneg %p98
      %p280 = pneg %p122
      %p281 = pneg %p119
      %p282 = pneg %p143
      %p283 = pneg %p140
      %p284 = pneg %p164
      %p285 = pneg %p161
      %p286 = pneg %p192
      %p287 = pneg %p189
      %s288 = smul.u32 2, %s22
      %p289 = scmp.lt.s32.totalorder %s21, 1
      %s290 = scalar_select %p289, %s21, 1
      %p291 = scmp.lt.s32.totalorder %s288, 1
      %s292 = scalar_select %p291, %s288, 1
      %s293 = smul.addr %s290, 4
      %s294 = sadd.s32 %s292, %s293
      %s295 = smul.addr %s294, 8
      %s296 = scalar_lea.vmem %s6, %s295
      %s297 = smul.u32 2, %s22
      %p298 = scmp.lt.s32.totalorder %s21, 1
      %s299 = scalar_select %p298, %s21, 1
      %p300 = scmp.lt.s32.totalorder %s297, 1
      %s301 = scalar_select %p300, %s297, 1
      %s302 = smul.addr %s299, 2
      %s303 = sadd.s32 %s301, %s302
      %s304 = smul.addr %s303, 8
      %s305 = scalar_lea.vmem %s0, %s304
      %s306 = smul.u32 2, %s22
      %s307 = smul.u32 2, %s22
      %p308 = scmp.lt.s32.totalorder %s21, 1
      %s309 = scalar_select %p308, %s21, 1
      %p310 = scmp.lt.s32.totalorder %s307, 1
      %s311 = scalar_select %p310, %s307, 1
      %s312 = smul.addr %s309, 4
      %s313 = sadd.s32 %s311, %s312
      %s314 = smul.addr %s313, 8
      %s315 = scalar_lea.vmem %s1, %s314
      %s316 = smul.u32 2, %s22
      %s317 = smul.u32 2, %s22
      %p318 = scmp.lt.s32.totalorder %s21, 1
      %s319 = scalar_select %p318, %s21, 1
      %p320 = scmp.lt.s32.totalorder %s317, 1
      %s321 = scalar_select %p320, %s317, 1
      %s322 = smul.addr %s319, 4
      %s323 = sadd.s32 %s321, %s322
      %s324 = smul.addr %s323, 8
      %s325 = scalar_lea.vmem %s6, %s324
      %s326 = smul.u32 2, %s22
      %v327 = vld [vmem:[%s305] sm:$0xff]
      %v328 = vld [vmem:[%s305 + $0x8] sm:$0xff]
      %v329 = vld [vmem:[%s2] sm:$0xff]
      %v330 = vld [vmem:[%s3] sm:$0xff]
      %332 = vset.pattern.permute.xlu0 0
      %333 = vperm.xlu0 %332, %v330
      %v334 = vpop.permute.xlu0 %333
      %vm336 = vcmask 64512
      %v338 = vsel %vm336, %v329, 0
      %340 = vmatprep.subr.mxu0 0.0
      %341 = vmatpush1.msra.mxu0 0.0
      %342 = vmatprep.subr.mxu0 0.0
      %343 = vmatpush1.msra.mxu0 0.0
      %344 = vmatprep.subr.mxu0 0.0
      %345 = vmatpush1.msra.mxu0 0.0
      %346 = vmatprep.subr.mxu0 0.0
      %347 = vmatpush1.msra.mxu0 0.0
      %348 = vmatprep.subr.mxu0 0.0
      %349 = vmatpush1.msra.mxu0 0.0
      %350 = vmatprep.subr.mxu0 0.0
      %351 = vmatpush1.msra.mxu0 0.0
      %352 = vmatprep.subr.mxu0 0.0
      %353 = vmatpush1.msra.mxu0 0.0
      %354 = vmatprep.subr.mxu0 0.0
      %355 = vmatpush1.msra.mxu0 0.0
      %356 = vmatprep.subr.mxu0 0.0
      %357 = vmatpush1.msra.mxu0 0.0
      %358 = vmatprep.subr.mxu0 0.0
      %359 = vmatpush1.msra.mxu0 0.0
      %360 = vmatprep.subr.mxu0 0.0
      %361 = vmatpush1.msra.mxu0 0.0
      %362 = vmatprep.subr.mxu0 0.0
      %363 = vmatpush1.msra.mxu0 0.0
      %364 = vmatprep.subr.mxu0 0.0
      %365 = vmatpush1.msra.mxu0 0.0
      %366 = vmatprep.subr.mxu0 0.0
      %367 = vmatpush1.msra.mxu0 0.0
      %368 = vmatprep.subr.mxu0 0.0
      %369 = vmatpush1.msra.mxu0 0.0
      %v370 = vand.u32 %v328, 4294901760
      %371 = vmatprep.subr.mxu0 %v370
      %v372 = vand.u32 %v327, 4294901760
      %373 = vmatpush1.msra.mxu0 %v372
      %374 = vmatprep.subr.mxu0 0.0
      %375 = vmatpush2.msra.mxu0 0.0
      %376 = vmatprep.subr.mxu0 0.0
      %377 = vmatpush2.msra.mxu0 0.0
      %378 = vmatprep.subr.mxu0 0.0
      %379 = vmatpush2.msra.mxu0 0.0
      %380 = vmatprep.subr.mxu0 0.0
      %381 = vmatpush2.msra.mxu0 0.0
      %382 = vmatprep.subr.mxu0 0.0
      %383 = vmatpush2.msra.mxu0 0.0
      %384 = vmatprep.subr.mxu0 0.0
      %385 = vmatpush2.msra.mxu0 0.0
      %386 = vmatprep.subr.mxu0 0.0
      %387 = vmatpush2.msra.mxu0 0.0
      %388 = vmatprep.subr.mxu0 0.0
      %389 = vmatpush2.msra.mxu0 0.0
      %390 = vmatprep.subr.mxu0 0.0
      %391 = vmatpush2.msra.mxu0 0.0
      %392 = vmatprep.subr.mxu0 0.0
      %393 = vmatpush2.msra.mxu0 0.0
      %394 = vmatprep.subr.mxu0 0.0
      %395 = vmatpush2.msra.mxu0 0.0
      %396 = vmatprep.subr.mxu0 0.0
      %397 = vmatpush2.msra.mxu0 0.0
      %398 = vmatprep.subr.mxu0 0.0
      %399 = vmatpush2.msra.mxu0 0.0
      %400 = vmatprep.subr.mxu0 0.0
      %401 = vmatpush2.msra.mxu0 0.0
      %402 = vmatprep.subr.mxu0 0.0
      %403 = vmatpush2.msra.mxu0 0.0
      %404 = vmatprep.subr.mxu0 0.0
      %405 = vmatpush2.msra.mxu0 0.0
      %406 = vmatprep.mubr.f32.mxu0 0.0
      %v407 = vand.u32 %v338, 4294901760
      %v408 = vsub.f32 %v338, %v407
      %v409 = vand.u32 %v408, 4294901760
      %v410 = vsub.f32 %v408, %v409
      %v411 = vand.u32 %v410, 4294901760
      %412 = vmatmul.mubr.f32.gmra.mxu0 %v411
      %v413 = vpop.f32.mrf.mxu0
      %v414 = vadd.f32 %v334, %v413
      %v415 = vpop.f32.mrf.mxu0
      %v416 = vadd.f32 %v334, %v415
      %417 = vdwg.mxu0
      %418 = vmatprep.subr.mxu0 0.0
      %419 = vmatpush1.msra.mxu0 0.0
      %420 = vmatprep.subr.mxu0 0.0
      %421 = vmatpush1.msra.mxu0 0.0
      %422 = vmatprep.subr.mxu0 0.0
      %423 = vmatpush1.msra.mxu0 0.0
      %424 = vmatprep.subr.mxu0 0.0
      %425 = vmatpush1.msra.mxu0 0.0
      %426 = vmatprep.subr.mxu0 0.0
      %427 = vmatpush1.msra.mxu0 0.0
      %428 = vmatprep.subr.mxu0 0.0
      %429 = vmatpush1.msra.mxu0 0.0
      %430 = vmatprep.subr.mxu0 0.0
      %431 = vmatpush1.msra.mxu0 0.0
      %432 = vmatprep.subr.mxu0 0.0
      %433 = vmatpush1.msra.mxu0 0.0
      %434 = vmatprep.subr.mxu0 0.0
      %435 = vmatpush1.msra.mxu0 0.0
      %436 = vmatprep.subr.mxu0 0.0
      %437 = vmatpush1.msra.mxu0 0.0
      %438 = vmatprep.subr.mxu0 0.0
      %439 = vmatpush1.msra.mxu0 0.0
      %440 = vmatprep.subr.mxu0 0.0
      %441 = vmatpush1.msra.mxu0 0.0
      %442 = vmatprep.subr.mxu0 0.0
      %443 = vmatpush1.msra.mxu0 0.0
      %444 = vmatprep.subr.mxu0 0.0
      %445 = vmatpush1.msra.mxu0 0.0
      %446 = vmatprep.subr.mxu0 0.0
      %447 = vmatpush1.msra.mxu0 0.0
      %v448 = vand.u32 %v328, 4294901760
      %v449 = vsub.f32 %v328, %v448
      %v450 = vand.u32 %v449, 4294901760
      %v451 = vsub.f32 %v449, %v450
      %v452 = vand.u32 %v451, 4294901760
      %453 = vmatprep.subr.mxu0 %v452
      %v454 = vand.u32 %v327, 4294901760
      %v455 = vsub.f32 %v327, %v454
      %v456 = vand.u32 %v455, 4294901760
      %v457 = vsub.f32 %v455, %v456
      %v458 = vand.u32 %v457, 4294901760
      %459 = vmatpush1.msra.mxu0 %v458
      %460 = vmatprep.subr.mxu0 0.0
      %461 = vmatpush2.msra.mxu0 0.0
      %462 = vmatprep.subr.mxu0 0.0
      %463 = vmatpush2.msra.mxu0 0.0
      %464 = vmatprep.subr.mxu0 0.0
      %465 = vmatpush2.msra.mxu0 0.0
      %466 = vmatprep.subr.mxu0 0.0
      %467 = vmatpush2.msra.mxu0 0.0
      %468 = vmatprep.subr.mxu0 0.0
      %469 = vmatpush2.msra.mxu0 0.0
      %470 = vmatprep.subr.mxu0 0.0
      %471 = vmatpush2.msra.mxu0 0.0
      %472 = vmatprep.subr.mxu0 0.0
      %473 = vmatpush2.msra.mxu0 0.0
      %474 = vmatprep.subr.mxu0 0.0
      %475 = vmatpush2.msra.mxu0 0.0
      %476 = vmatprep.subr.mxu0 0.0
      %477 = vmatpush2.msra.mxu0 0.0
      %478 = vmatprep.subr.mxu0 0.0
      %479 = vmatpush2.msra.mxu0 0.0
      %480 = vmatprep.subr.mxu0 0.0
      %481 = vmatpush2.msra.mxu0 0.0
      %482 = vmatprep.subr.mxu0 0.0
      %483 = vmatpush2.msra.mxu0 0.0
      %484 = vmatprep.subr.mxu0 0.0
      %485 = vmatpush2.msra.mxu0 0.0
      %486 = vmatprep.subr.mxu0 0.0
      %487 = vmatpush2.msra.mxu0 0.0
      %488 = vmatprep.subr.mxu0 0.0
      %489 = vmatpush2.msra.mxu0 0.0
      %490 = vmatprep.subr.mxu0 0.0
      %491 = vmatpush2.msra.mxu0 0.0
      %492 = vmatprep.mubr.f32.mxu0 0.0
      %v493 = vand.u32 %v338, 4294901760
      %494 = vmatmul.mubr.f32.gmra.mxu0 %v493
      %v495 = vpop.f32.mrf.mxu0
      %v496 = vadd.f32 %v414, %v495
      %v497 = vpop.f32.mrf.mxu0
      %v498 = vadd.f32 %v416, %v497
      %499 = vdwg.mxu0
      %500 = vmatprep.subr.mxu0 0.0
      %501 = vmatpush1.msra.mxu0 0.0
      %502 = vmatprep.subr.mxu0 0.0
      %503 = vmatpush1.msra.mxu0 0.0
      %504 = vmatprep.subr.mxu0 0.0
      %505 = vmatpush1.msra.mxu0 0.0
      %506 = vmatprep.subr.mxu0 0.0
      %507 = vmatpush1.msra.mxu0 0.0
      %508 = vmatprep.subr.mxu0 0.0
      %509 = vmatpush1.msra.mxu0 0.0
      %510 = vmatprep.subr.mxu0 0.0
      %511 = vmatpush1.msra.mxu0 0.0
      %512 = vmatprep.subr.mxu0 0.0
      %513 = vmatpush1.msra.mxu0 0.0
      %514 = vmatprep.subr.mxu0 0.0
      %515 = vmatpush1.msra.mxu0 0.0
      %516 = vmatprep.subr.mxu0 0.0
      %517 = vmatpush1.msra.mxu0 0.0
      %518 = vmatprep.subr.mxu0 0.0
      %519 = vmatpush1.msra.mxu0 0.0
      %520 = vmatprep.subr.mxu0 0.0
      %521 = vmatpush1.msra.mxu0 0.0
      %522 = vmatprep.subr.mxu0 0.0
      %523 = vmatpush1.msra.mxu0 0.0
      %524 = vmatprep.subr.mxu0 0.0
      %525 = vmatpush1.msra.mxu0 0.0
      %526 = vmatprep.subr.mxu0 0.0
      %527 = vmatpush1.msra.mxu0 0.0
      %528 = vmatprep.subr.mxu0 0.0
      %529 = vmatpush1.msra.mxu0 0.0
      %v530 = vand.u32 %v328, 4294901760
      %v531 = vsub.f32 %v328, %v530
      %532 = vmatprep.subr.mxu0 %v531
      %v533 = vand.u32 %v327, 4294901760
      %v534 = vsub.f32 %v327, %v533
      %535 = vmatpush1.msra.mxu0 %v534
      %536 = vmatprep.subr.mxu0 0.0
      %537 = vmatpush2.msra.mxu0 0.0
      %538 = vmatprep.subr.mxu0 0.0
      %539 = vmatpush2.msra.mxu0 0.0
      %540 = vmatprep.subr.mxu0 0.0
      %541 = vmatpush2.msra.mxu0 0.0
      %542 = vmatprep.subr.mxu0 0.0
      %543 = vmatpush2.msra.mxu0 0.0
      %544 = vmatprep.subr.mxu0 0.0
      %545 = vmatpush2.msra.mxu0 0.0
      %546 = vmatprep.subr.mxu0 0.0
      %547 = vmatpush2.msra.mxu0 0.0
      %548 = vmatprep.subr.mxu0 0.0
      %549 = vmatpush2.msra.mxu0 0.0
      %550 = vmatprep.subr.mxu0 0.0
      %551 = vmatpush2.msra.mxu0 0.0
      %552 = vmatprep.subr.mxu0 0.0
      %553 = vmatpush2.msra.mxu0 0.0
      %554 = vmatprep.subr.mxu0 0.0
      %555 = vmatpush2.msra.mxu0 0.0
      %556 = vmatprep.subr.mxu0 0.0
      %557 = vmatpush2.msra.mxu0 0.0
      %558 = vmatprep.subr.mxu0 0.0
      %559 = vmatpush2.msra.mxu0 0.0
      %560 = vmatprep.subr.mxu0 0.0
      %561 = vmatpush2.msra.mxu0 0.0
      %562 = vmatprep.subr.mxu0 0.0
      %563 = vmatpush2.msra.mxu0 0.0
      %564 = vmatprep.subr.mxu0 0.0
      %565 = vmatpush2.msra.mxu0 0.0
      %566 = vmatprep.subr.mxu0 0.0
      %567 = vmatpush2.msra.mxu0 0.0
      %568 = vmatprep.mubr.f32.mxu0 0.0
      %v569 = vand.u32 %v338, 4294901760
      %v570 = vsub.f32 %v338, %v569
      %571 = vmatmul.mubr.f32.gmra.mxu0 %v570
      %v572 = vpop.f32.mrf.mxu0
      %v573 = vadd.f32 %v496, %v572
      %v574 = vpop.f32.mrf.mxu0
      %v575 = vadd.f32 %v498, %v574
      %576 = vdwg.mxu0
      %577 = vmatprep.subr.mxu0 0.0
      %578 = vmatpush1.msra.mxu0 0.0
      %579 = vmatprep.subr.mxu0 0.0
      %580 = vmatpush1.msra.mxu0 0.0
      %581 = vmatprep.subr.mxu0 0.0
      %582 = vmatpush1.msra.mxu0 0.0
      %583 = vmatprep.subr.mxu0 0.0
      %584 = vmatpush1.msra.mxu0 0.0
      %585 = vmatprep.subr.mxu0 0.0
      %586 = vmatpush1.msra.mxu0 0.0
      %587 = vmatprep.subr.mxu0 0.0
      %588 = vmatpush1.msra.mxu0 0.0
      %589 = vmatprep.subr.mxu0 0.0
      %590 = vmatpush1.msra.mxu0 0.0
      %591 = vmatprep.subr.mxu0 0.0
      %592 = vmatpush1.msra.mxu0 0.0
      %593 = vmatprep.subr.mxu0 0.0
      %594 = vmatpush1.msra.mxu0 0.0
      %595 = vmatprep.subr.mxu0 0.0
      %596 = vmatpush1.msra.mxu0 0.0
      %597 = vmatprep.subr.mxu0 0.0
      %598 = vmatpush1.msra.mxu0 0.0
      %599 = vmatprep.subr.mxu0 0.0
      %600 = vmatpush1.msra.mxu0 0.0
      %601 = vmatprep.subr.mxu0 0.0
      %602 = vmatpush1.msra.mxu0 0.0
      %603 = vmatprep.subr.mxu0 0.0
      %604 = vmatpush1.msra.mxu0 0.0
      %605 = vmatprep.subr.mxu0 0.0
      %606 = vmatpush1.msra.mxu0 0.0
      %v607 = vand.u32 %v328, 4294901760
      %608 = vmatprep.subr.mxu0 %v607
      %v609 = vand.u32 %v327, 4294901760
      %610 = vmatpush1.msra.mxu0 %v609
      %611 = vmatprep.subr.mxu0 0.0
      %612 = vmatpush2.msra.mxu0 0.0
      %613 = vmatprep.subr.mxu0 0.0
      %614 = vmatpush2.msra.mxu0 0.0
      %615 = vmatprep.subr.mxu0 0.0
      %616 = vmatpush2.msra.mxu0 0.0
      %617 = vmatprep.subr.mxu0 0.0
      %618 = vmatpush2.msra.mxu0 0.0
      %619 = vmatprep.subr.mxu0 0.0
      %620 = vmatpush2.msra.mxu0 0.0
      %621 = vmatprep.subr.mxu0 0.0
      %622 = vmatpush2.msra.mxu0 0.0
      %623 = vmatprep.subr.mxu0 0.0
      %624 = vmatpush2.msra.mxu0 0.0
      %625 = vmatprep.subr.mxu0 0.0
      %626 = vmatpush2.msra.mxu0 0.0
      %627 = vmatprep.subr.mxu0 0.0
      %628 = vmatpush2.msra.mxu0 0.0
      %629 = vmatprep.subr.mxu0 0.0
      %630 = vmatpush2.msra.mxu0 0.0
      %631 = vmatprep.subr.mxu0 0.0
      %632 = vmatpush2.msra.mxu0 0.0
      %633 = vmatprep.subr.mxu0 0.0
      %634 = vmatpush2.msra.mxu0 0.0
      %635 = vmatprep.subr.mxu0 0.0
      %636 = vmatpush2.msra.mxu0 0.0
      %637 = vmatprep.subr.mxu0 0.0
      %638 = vmatpush2.msra.mxu0 0.0
      %639 = vmatprep.subr.mxu0 0.0
      %640 = vmatpush2.msra.mxu0 0.0
      %641 = vmatprep.subr.mxu0 0.0
      %642 = vmatpush2.msra.mxu0 0.0
      %643 = vmatprep.mubr.f32.mxu0 0.0
      %v644 = vand.u32 %v338, 4294901760
      %v645 = vsub.f32 %v338, %v644
      %v646 = vand.u32 %v645, 4294901760
      %647 = vmatmul.mubr.f32.gmra.mxu0 %v646
      %v648 = vpop.f32.mrf.mxu0
      %v649 = vadd.f32 %v573, %v648
      %v650 = vpop.f32.mrf.mxu0
      %v651 = vadd.f32 %v575, %v650
      %652 = vdwg.mxu0
      %653 = vmatprep.subr.mxu0 0.0
      %654 = vmatpush1.msra.mxu0 0.0
      %655 = vmatprep.subr.mxu0 0.0
      %656 = vmatpush1.msra.mxu0 0.0
      %657 = vmatprep.subr.mxu0 0.0
      %658 = vmatpush1.msra.mxu0 0.0
      %659 = vmatprep.subr.mxu0 0.0
      %660 = vmatpush1.msra.mxu0 0.0
      %661 = vmatprep.subr.mxu0 0.0
      %662 = vmatpush1.msra.mxu0 0.0
      %663 = vmatprep.subr.mxu0 0.0
      %664 = vmatpush1.msra.mxu0 0.0
      %665 = vmatprep.subr.mxu0 0.0
      %666 = vmatpush1.msra.mxu0 0.0
      %667 = vmatprep.subr.mxu0 0.0
      %668 = vmatpush1.msra.mxu0 0.0
      %669 = vmatprep.subr.mxu0 0.0
      %670 = vmatpush1.msra.mxu0 0.0
      %671 = vmatprep.subr.mxu0 0.0
      %672 = vmatpush1.msra.mxu0 0.0
      %673 = vmatprep.subr.mxu0 0.0
      %674 = vmatpush1.msra.mxu0 0.0
      %675 = vmatprep.subr.mxu0 0.0
      %676 = vmatpush1.msra.mxu0 0.0
      %677 = vmatprep.subr.mxu0 0.0
      %678 = vmatpush1.msra.mxu0 0.0
      %679 = vmatprep.subr.mxu0 0.0
      %680 = vmatpush1.msra.mxu0 0.0
      %681 = vmatprep.subr.mxu0 0.0
      %682 = vmatpush1.msra.mxu0 0.0
      %v683 = vand.u32 %v328, 4294901760
      %v684 = vsub.f32 %v328, %v683
      %v685 = vand.u32 %v684, 4294901760
      %686 = vmatprep.subr.mxu0 %v685
      %v687 = vand.u32 %v327, 4294901760
      %v688 = vsub.f32 %v327, %v687
      %v689 = vand.u32 %v688, 4294901760
      %690 = vmatpush1.msra.mxu0 %v689
      %691 = vmatprep.subr.mxu0 0.0
      %692 = vmatpush2.msra.mxu0 0.0
      %693 = vmatprep.subr.mxu0 0.0
      %694 = vmatpush2.msra.mxu0 0.0
      %695 = vmatprep.subr.mxu0 0.0
      %696 = vmatpush2.msra.mxu0 0.0
      %697 = vmatprep.subr.mxu0 0.0
      %698 = vmatpush2.msra.mxu0 0.0
      %699 = vmatprep.subr.mxu0 0.0
      %700 = vmatpush2.msra.mxu0 0.0
      %701 = vmatprep.subr.mxu0 0.0
      %702 = vmatpush2.msra.mxu0 0.0
      %703 = vmatprep.subr.mxu0 0.0
      %704 = vmatpush2.msra.mxu0 0.0
      %705 = vmatprep.subr.mxu0 0.0
      %706 = vmatpush2.msra.mxu0 0.0
      %707 = vmatprep.subr.mxu0 0.0
      %708 = vmatpush2.msra.mxu0 0.0
      %709 = vmatprep.subr.mxu0 0.0
      %710 = vmatpush2.msra.mxu0 0.0
      %711 = vmatprep.subr.mxu0 0.0
      %712 = vmatpush2.msra.mxu0 0.0
      %713 = vmatprep.subr.mxu0 0.0
      %714 = vmatpush2.msra.mxu0 0.0
      %715 = vmatprep.subr.mxu0 0.0
      %716 = vmatpush2.msra.mxu0 0.0
      %717 = vmatprep.subr.mxu0 0.0
      %718 = vmatpush2.msra.mxu0 0.0
      %719 = vmatprep.subr.mxu0 0.0
      %720 = vmatpush2.msra.mxu0 0.0
      %721 = vmatprep.subr.mxu0 0.0
      %722 = vmatpush2.msra.mxu0 0.0
      %723 = vmatprep.mubr.f32.mxu0 0.0
      %v724 = vand.u32 %v338, 4294901760
      %725 = vmatmul.mubr.f32.gmra.mxu0 %v724
      %v726 = vpop.f32.mrf.mxu0
      %v727 = vadd.f32 %v649, %v726
      %v728 = vpop.f32.mrf.mxu0
      %v729 = vadd.f32 %v651, %v728
      %730 = vdwg.mxu0
      %731 = vmatprep.subr.mxu0 0.0
      %732 = vmatpush1.msra.mxu0 0.0
      %733 = vmatprep.subr.mxu0 0.0
      %734 = vmatpush1.msra.mxu0 0.0
      %735 = vmatprep.subr.mxu0 0.0
      %736 = vmatpush1.msra.mxu0 0.0
      %737 = vmatprep.subr.mxu0 0.0
      %738 = vmatpush1.msra.mxu0 0.0
      %739 = vmatprep.subr.mxu0 0.0
      %740 = vmatpush1.msra.mxu0 0.0
      %741 = vmatprep.subr.mxu0 0.0
      %742 = vmatpush1.msra.mxu0 0.0
      %743 = vmatprep.subr.mxu0 0.0
      %744 = vmatpush1.msra.mxu0 0.0
      %745 = vmatprep.subr.mxu0 0.0
      %746 = vmatpush1.msra.mxu0 0.0
      %747 = vmatprep.subr.mxu0 0.0
      %748 = vmatpush1.msra.mxu0 0.0
      %749 = vmatprep.subr.mxu0 0.0
      %750 = vmatpush1.msra.mxu0 0.0
      %751 = vmatprep.subr.mxu0 0.0
      %752 = vmatpush1.msra.mxu0 0.0
      %753 = vmatprep.subr.mxu0 0.0
      %754 = vmatpush1.msra.mxu0 0.0
      %755 = vmatprep.subr.mxu0 0.0
      %756 = vmatpush1.msra.mxu0 0.0
      %757 = vmatprep.subr.mxu0 0.0
      %758 = vmatpush1.msra.mxu0 0.0
      %759 = vmatprep.subr.mxu0 0.0
      %760 = vmatpush1.msra.mxu0 0.0
      %v761 = vand.u32 %v328, 4294901760
      %762 = vmatprep.subr.mxu0 %v761
      %v763 = vand.u32 %v327, 4294901760
      %764 = vmatpush1.msra.mxu0 %v763
      %765 = vmatprep.subr.mxu0 0.0
      %766 = vmatpush2.msra.mxu0 0.0
      %767 = vmatprep.subr.mxu0 0.0
      %768 = vmatpush2.msra.mxu0 0.0
      %769 = vmatprep.subr.mxu0 0.0
      %770 = vmatpush2.msra.mxu0 0.0
      %771 = vmatprep.subr.mxu0 0.0
      %772 = vmatpush2.msra.mxu0 0.0
      %773 = vmatprep.subr.mxu0 0.0
      %774 = vmatpush2.msra.mxu0 0.0
      %775 = vmatprep.subr.mxu0 0.0
      %776 = vmatpush2.msra.mxu0 0.0
      %777 = vmatprep.subr.mxu0 0.0
      %778 = vmatpush2.msra.mxu0 0.0
      %779 = vmatprep.subr.mxu0 0.0
      %780 = vmatpush2.msra.mxu0 0.0
      %781 = vmatprep.subr.mxu0 0.0
      %782 = vmatpush2.msra.mxu0 0.0
      %783 = vmatprep.subr.mxu0 0.0
      %784 = vmatpush2.msra.mxu0 0.0
      %785 = vmatprep.subr.mxu0 0.0
      %786 = vmatpush2.msra.mxu0 0.0
      %787 = vmatprep.subr.mxu0 0.0
      %788 = vmatpush2.msra.mxu0 0.0
      %789 = vmatprep.subr.mxu0 0.0
      %790 = vmatpush2.msra.mxu0 0.0
      %791 = vmatprep.subr.mxu0 0.0
      %792 = vmatpush2.msra.mxu0 0.0
      %793 = vmatprep.subr.mxu0 0.0
      %794 = vmatpush2.msra.mxu0 0.0
      %795 = vmatprep.subr.mxu0 0.0
      %796 = vmatpush2.msra.mxu0 0.0
      %797 = vmatprep.mubr.f32.mxu0 0.0
      %v798 = vand.u32 %v338, 4294901760
      %799 = vmatmul.mubr.f32.gmra.mxu0 %v798
      %v800 = vpop.f32.mrf.mxu0
      %v801 = vadd.f32 %v727, %v800
      %v802 = vpop.f32.mrf.mxu0
      %v803 = vadd.f32 %v729, %v802
      %804 = vdwg.mxu0
      %v805 = vmax.f32 %v801, 0.0
      %v806 = vmax.f32 %v803, 0.0
      %v807 = vld [vmem:[%s4] sm:$0xff]
      %v808 = vld [vmem:[%s4 + $0x8] sm:$0xff]
      %v809 = vld [vmem:[%s5] sm:$0xff]
      %v810 = vld [vmem:[%s5 + $0x8] sm:$0xff]
      %812 = vset.pattern.permute.xlu0 0
      %813 = vperm.xlu0 %812, %v809
      %v814 = vpop.permute.xlu0 %813
      %817 = vset.pattern.permute.xlu0 0
      %818 = vperm.xlu0 %817, %v810
      %v819 = vpop.permute.xlu0 %818
      %v822 = vsel %vm336, %v807, 0
      %v825 = vsel %vm336, %v808, 0
      %827 = vmatprep.subr.mxu0 0.0
      %828 = vmatpush1.msra.mxu0 0.0
      %829 = vmatprep.subr.mxu0 0.0
      %830 = vmatpush1.msra.mxu0 0.0
      %831 = vmatprep.subr.mxu0 0.0
      %832 = vmatpush1.msra.mxu0 0.0
      %833 = vmatprep.subr.mxu0 0.0
      %834 = vmatpush1.msra.mxu0 0.0
      %835 = vmatprep.subr.mxu0 0.0
      %836 = vmatpush1.msra.mxu0 0.0
      %837 = vmatprep.subr.mxu0 0.0
      %838 = vmatpush1.msra.mxu0 0.0
      %839 = vmatprep.subr.mxu0 0.0
      %840 = vmatpush1.msra.mxu0 0.0
      %841 = vmatprep.subr.mxu0 0.0
      %842 = vmatpush1.msra.mxu0 0.0
      %843 = vmatprep.subr.mxu0 0.0
      %844 = vmatpush1.msra.mxu0 0.0
      %845 = vmatprep.subr.mxu0 0.0
      %846 = vmatpush1.msra.mxu0 0.0
      %847 = vmatprep.subr.mxu0 0.0
      %848 = vmatpush1.msra.mxu0 0.0
      %849 = vmatprep.subr.mxu0 0.0
      %850 = vmatpush1.msra.mxu0 0.0
      %851 = vmatprep.subr.mxu0 0.0
      %852 = vmatpush1.msra.mxu0 0.0
      %853 = vmatprep.subr.mxu0 0.0
      %854 = vmatpush1.msra.mxu0 0.0
      %855 = vmatprep.subr.mxu0 0.0
      %856 = vmatpush1.msra.mxu0 0.0
      %v857 = vand.u32 %v806, 4294901760
      %858 = vmatprep.subr.mxu0 %v857
      %v859 = vand.u32 %v805, 4294901760
      %860 = vmatpush1.msra.mxu0 %v859
      %861 = vmatprep.subr.mxu0 0.0
      %862 = vmatpush2.msra.mxu0 0.0
      %863 = vmatprep.subr.mxu0 0.0
      %864 = vmatpush2.msra.mxu0 0.0
      %865 = vmatprep.subr.mxu0 0.0
      %866 = vmatpush2.msra.mxu0 0.0
      %867 = vmatprep.subr.mxu0 0.0
      %868 = vmatpush2.msra.mxu0 0.0
      %869 = vmatprep.subr.mxu0 0.0
      %870 = vmatpush2.msra.mxu0 0.0
      %871 = vmatprep.subr.mxu0 0.0
      %872 = vmatpush2.msra.mxu0 0.0
      %873 = vmatprep.subr.mxu0 0.0
      %874 = vmatpush2.msra.mxu0 0.0
      %875 = vmatprep.subr.mxu0 0.0
      %876 = vmatpush2.msra.mxu0 0.0
      %877 = vmatprep.subr.mxu0 0.0
      %878 = vmatpush2.msra.mxu0 0.0
      %879 = vmatprep.subr.mxu0 0.0
      %880 = vmatpush2.msra.mxu0 0.0
      %881 = vmatprep.subr.mxu0 0.0
      %882 = vmatpush2.msra.mxu0 0.0
      %883 = vmatprep.subr.mxu0 0.0
      %884 = vmatpush2.msra.mxu0 0.0
      %885 = vmatprep.subr.mxu0 0.0
      %886 = vmatpush2.msra.mxu0 0.0
      %887 = vmatprep.subr.mxu0 0.0
      %888 = vmatpush2.msra.mxu0 0.0
      %889 = vmatprep.subr.mxu0 0.0
      %890 = vmatpush2.msra.mxu0 0.0
      %891 = vmatprep.subr.mxu0 0.0
      %892 = vmatpush2.msra.mxu0 0.0
      %893 = vmatprep.mubr.f32.mxu0 0.0
      %v894 = vand.u32 %v822, 4294901760
      %v895 = vsub.f32 %v822, %v894
      %v896 = vand.u32 %v895, 4294901760
      %v897 = vsub.f32 %v895, %v896
      %v898 = vand.u32 %v897, 4294901760
      %899 = vmatmul.mubr.f32.gmra.mxu0 %v898
      %v900 = vpop.f32.mrf.mxu0
      %v901 = vadd.f32 %v814, %v900
      %v902 = vpop.f32.mrf.mxu0
      %v903 = vadd.f32 %v814, %v902
      %904 = vmatprep.mubr.f32.mxu0 0.0
      %v905 = vand.u32 %v825, 4294901760
      %v906 = vsub.f32 %v825, %v905
      %v907 = vand.u32 %v906, 4294901760
      %v908 = vsub.f32 %v906, %v907
      %v909 = vand.u32 %v908, 4294901760
      %910 = vmatmul.mubr.f32.gmra.mxu0 %v909
      %v911 = vpop.f32.mrf.mxu0
      %v912 = vadd.f32 %v819, %v911
      %v913 = vpop.f32.mrf.mxu0
      %v914 = vadd.f32 %v819, %v913
      %915 = vdwg.mxu0
      %916 = vmatprep.subr.mxu0 0.0
      %917 = vmatpush1.msra.mxu0 0.0
      %918 = vmatprep.subr.mxu0 0.0
      %919 = vmatpush1.msra.mxu0 0.0
      %920 = vmatprep.subr.mxu0 0.0
      %921 = vmatpush1.msra.mxu0 0.0
      %922 = vmatprep.subr.mxu0 0.0
      %923 = vmatpush1.msra.mxu0 0.0
      %924 = vmatprep.subr.mxu0 0.0
      %925 = vmatpush1.msra.mxu0 0.0
      %926 = vmatprep.subr.mxu0 0.0
      %927 = vmatpush1.msra.mxu0 0.0
      %928 = vmatprep.subr.mxu0 0.0
      %929 = vmatpush1.msra.mxu0 0.0
      %930 = vmatprep.subr.mxu0 0.0
      %931 = vmatpush1.msra.mxu0 0.0
      %932 = vmatprep.subr.mxu0 0.0
      %933 = vmatpush1.msra.mxu0 0.0
      %934 = vmatprep.subr.mxu0 0.0
      %935 = vmatpush1.msra.mxu0 0.0
      %936 = vmatprep.subr.mxu0 0.0
      %937 = vmatpush1.msra.mxu0 0.0
      %938 = vmatprep.subr.mxu0 0.0
      %939 = vmatpush1.msra.mxu0 0.0
      %940 = vmatprep.subr.mxu0 0.0
      %941 = vmatpush1.msra.mxu0 0.0
      %942 = vmatprep.subr.mxu0 0.0
      %943 = vmatpush1.msra.mxu0 0.0
      %944 = vmatprep.subr.mxu0 0.0
      %945 = vmatpush1.msra.mxu0 0.0
      %v946 = vand.u32 %v806, 4294901760
      %v947 = vsub.f32 %v806, %v946
      %v948 = vand.u32 %v947, 4294901760
      %v949 = vsub.f32 %v947, %v948
      %v950 = vand.u32 %v949, 4294901760
      %951 = vmatprep.subr.mxu0 %v950
      %v952 = vand.u32 %v805, 4294901760
      %v953 = vsub.f32 %v805, %v952
      %v954 = vand.u32 %v953, 4294901760
      %v955 = vsub.f32 %v953, %v954
      %v956 = vand.u32 %v955, 4294901760
      %957 = vmatpush1.msra.mxu0 %v956
      %958 = vmatprep.subr.mxu0 0.0
      %959 = vmatpush2.msra.mxu0 0.0
      %960 = vmatprep.subr.mxu0 0.0
      %961 = vmatpush2.msra.mxu0 0.0
      %962 = vmatprep.subr.mxu0 0.0
      %963 = vmatpush2.msra.mxu0 0.0
      %964 = vmatprep.subr.mxu0 0.0
      %965 = vmatpush2.msra.mxu0 0.0
      %966 = vmatprep.subr.mxu0 0.0
      %967 = vmatpush2.msra.mxu0 0.0
      %968 = vmatprep.subr.mxu0 0.0
      %969 = vmatpush2.msra.mxu0 0.0
      %970 = vmatprep.subr.mxu0 0.0
      %971 = vmatpush2.msra.mxu0 0.0
      %972 = vmatprep.subr.mxu0 0.0
      %973 = vmatpush2.msra.mxu0 0.0
      %974 = vmatprep.subr.mxu0 0.0
      %975 = vmatpush2.msra.mxu0 0.0
      %976 = vmatprep.subr.mxu0 0.0
      %977 = vmatpush2.msra.mxu0 0.0
      %978 = vmatprep.subr.mxu0 0.0
      %979 = vmatpush2.msra.mxu0 0.0
      %980 = vmatprep.subr.mxu0 0.0
      %981 = vmatpush2.msra.mxu0 0.0
      %982 = vmatprep.subr.mxu0 0.0
      %983 = vmatpush2.msra.mxu0 0.0
      %984 = vmatprep.subr.mxu0 0.0
      %985 = vmatpush2.msra.mxu0 0.0
      %986 = vmatprep.subr.mxu0 0.0
      %987 = vmatpush2.msra.mxu0 0.0
      %988 = vmatprep.subr.mxu0 0.0
      %989 = vmatpush2.msra.mxu0 0.0
      %990 = vmatprep.mubr.f32.mxu0 0.0
      %v991 = vand.u32 %v822, 4294901760
      %992 = vmatmul.mubr.f32.gmra.mxu0 %v991
      %v993 = vpop.f32.mrf.mxu0
      %v994 = vadd.f32 %v901, %v993
      %v995 = vpop.f32.mrf.mxu0
      %v996 = vadd.f32 %v903, %v995
      %997 = vmatprep.mubr.f32.mxu0 0.0
      %v998 = vand.u32 %v825, 4294901760
      %999 = vmatmul.mubr.f32.gmra.mxu0 %v998
      %v1000 = vpop.f32.mrf.mxu0
      %v1001 = vadd.f32 %v912, %v1000
      %v1002 = vpop.f32.mrf.mxu0
      %v1003 = vadd.f32 %v914, %v1002
      %1004 = vdwg.mxu0
      %1005 = vmatprep.subr.mxu0 0.0
      %1006 = vmatpush1.msra.mxu0 0.0
      %1007 = vmatprep.subr.mxu0 0.0
      %1008 = vmatpush1.msra.mxu0 0.0
      %1009 = vmatprep.subr.mxu0 0.0
      %1010 = vmatpush1.msra.mxu0 0.0
      %1011 = vmatprep.subr.mxu0 0.0
      %1012 = vmatpush1.msra.mxu0 0.0
      %1013 = vmatprep.subr.mxu0 0.0
      %1014 = vmatpush1.msra.mxu0 0.0
      %1015 = vmatprep.subr.mxu0 0.0
      %1016 = vmatpush1.msra.mxu0 0.0
      %1017 = vmatprep.subr.mxu0 0.0
      %1018 = vmatpush1.msra.mxu0 0.0
      %1019 = vmatprep.subr.mxu0 0.0
      %1020 = vmatpush1.msra.mxu0 0.0
      %1021 = vmatprep.subr.mxu0 0.0
      %1022 = vmatpush1.msra.mxu0 0.0
      %1023 = vmatprep.subr.mxu0 0.0
      %1024 = vmatpush1.msra.mxu0 0.0
      %1025 = vmatprep.subr.mxu0 0.0
      %1026 = vmatpush1.msra.mxu0 0.0
      %1027 = vmatprep.subr.mxu0 0.0
      %1028 = vmatpush1.msra.mxu0 0.0
      %1029 = vmatprep.subr.mxu0 0.0
      %1030 = vmatpush1.msra.mxu0 0.0
      %1031 = vmatprep.subr.mxu0 0.0
      %1032 = vmatpush1.msra.mxu0 0.0
      %1033 = vmatprep.subr.mxu0 0.0
      %1034 = vmatpush1.msra.mxu0 0.0
      %v1035 = vand.u32 %v806, 4294901760
      %v1036 = vsub.f32 %v806, %v1035
      %1037 = vmatprep.subr.mxu0 %v1036
      %v1038 = vand.u32 %v805, 4294901760
      %v1039 = vsub.f32 %v805, %v1038
      %1040 = vmatpush1.msra.mxu0 %v1039
      %1041 = vmatprep.subr.mxu0 0.0
      %1042 = vmatpush2.msra.mxu0 0.0
      %1043 = vmatprep.subr.mxu0 0.0
      %1044 = vmatpush2.msra.mxu0 0.0
      %1045 = vmatprep.subr.mxu0 0.0
      %1046 = vmatpush2.msra.mxu0 0.0
      %1047 = vmatprep.subr.mxu0 0.0
      %1048 = vmatpush2.msra.mxu0 0.0
      %1049 = vmatprep.subr.mxu0 0.0
      %1050 = vmatpush2.msra.mxu0 0.0
      %1051 = vmatprep.subr.mxu0 0.0
      %1052 = vmatpush2.msra.mxu0 0.0
      %1053 = vmatprep.subr.mxu0 0.0
      %1054 = vmatpush2.msra.mxu0 0.0
      %1055 = vmatprep.subr.mxu0 0.0
      %1056 = vmatpush2.msra.mxu0 0.0
      %1057 = vmatprep.subr.mxu0 0.0
      %1058 = vmatpush2.msra.mxu0 0.0
      %1059 = vmatprep.subr.mxu0 0.0
      %1060 = vmatpush2.msra.mxu0 0.0
      %1061 = vmatprep.subr.mxu0 0.0
      %1062 = vmatpush2.msra.mxu0 0.0
      %1063 = vmatprep.subr.mxu0 0.0
      %1064 = vmatpush2.msra.mxu0 0.0
      %1065 = vmatprep.subr.mxu0 0.0
      %1066 = vmatpush2.msra.mxu0 0.0
      %1067 = vmatprep.subr.mxu0 0.0
      %1068 = vmatpush2.msra.mxu0 0.0
      %1069 = vmatprep.subr.mxu0 0.0
      %1070 = vmatpush2.msra.mxu0 0.0
      %1071 = vmatprep.subr.mxu0 0.0
      %1072 = vmatpush2.msra.mxu0 0.0
      %1073 = vmatprep.mubr.f32.mxu0 0.0
      %v1074 = vand.u32 %v822, 4294901760
      %v1075 = vsub.f32 %v822, %v1074
      %1076 = vmatmul.mubr.f32.gmra.mxu0 %v1075
      %v1077 = vpop.f32.mrf.mxu0
      %v1078 = vadd.f32 %v994, %v1077
      %v1079 = vpop.f32.mrf.mxu0
      %v1080 = vadd.f32 %v996, %v1079
      %1081 = vmatprep.mubr.f32.mxu0 0.0
      %v1082 = vand.u32 %v825, 4294901760
      %v1083 = vsub.f32 %v825, %v1082
      %1084 = vmatmul.mubr.f32.gmra.mxu0 %v1083
      %v1085 = vpop.f32.mrf.mxu0
      %v1086 = vadd.f32 %v1001, %v1085
      %v1087 = vpop.f32.mrf.mxu0
      %v1088 = vadd.f32 %v1003, %v1087
      %1089 = vdwg.mxu0
      %1090 = vmatprep.subr.mxu0 0.0
      %1091 = vmatpush1.msra.mxu0 0.0
      %1092 = vmatprep.subr.mxu0 0.0
      %1093 = vmatpush1.msra.mxu0 0.0
      %1094 = vmatprep.subr.mxu0 0.0
      %1095 = vmatpush1.msra.mxu0 0.0
      %1096 = vmatprep.subr.mxu0 0.0
      %1097 = vmatpush1.msra.mxu0 0.0
      %1098 = vmatprep.subr.mxu0 0.0
      %1099 = vmatpush1.msra.mxu0 0.0
      %1100 = vmatprep.subr.mxu0 0.0
      %1101 = vmatpush1.msra.mxu0 0.0
      %1102 = vmatprep.subr.mxu0 0.0
      %1103 = vmatpush1.msra.mxu0 0.0
      %1104 = vmatprep.subr.mxu0 0.0
      %1105 = vmatpush1.msra.mxu0 0.0
      %1106 = vmatprep.subr.mxu0 0.0
      %1107 = vmatpush1.msra.mxu0 0.0
      %1108 = vmatprep.subr.mxu0 0.0
      %1109 = vmatpush1.msra.mxu0 0.0
      %1110 = vmatprep.subr.mxu0 0.0
      %1111 = vmatpush1.msra.mxu0 0.0
      %1112 = vmatprep.subr.mxu0 0.0
      %1113 = vmatpush1.msra.mxu0 0.0
      %1114 = vmatprep.subr.mxu0 0.0
      %1115 = vmatpush1.msra.mxu0 0.0
      %1116 = vmatprep.subr.mxu0 0.0
      %1117 = vmatpush1.msra.mxu0 0.0
      %1118 = vmatprep.subr.mxu0 0.0
      %1119 = vmatpush1.msra.mxu0 0.0
      %v1120 = vand.u32 %v806, 4294901760
      %1121 = vmatprep.subr.mxu0 %v1120
      %v1122 = vand.u32 %v805, 4294901760
      %1123 = vmatpush1.msra.mxu0 %v1122
      %1124 = vmatprep.subr.mxu0 0.0
      %1125 = vmatpush2.msra.mxu0 0.0
      %1126 = vmatprep.subr.mxu0 0.0
      %1127 = vmatpush2.msra.mxu0 0.0
      %1128 = vmatprep.subr.mxu0 0.0
      %1129 = vmatpush2.msra.mxu0 0.0
      %1130 = vmatprep.subr.mxu0 0.0
      %1131 = vmatpush2.msra.mxu0 0.0
      %1132 = vmatprep.subr.mxu0 0.0
      %1133 = vmatpush2.msra.mxu0 0.0
      %1134 = vmatprep.subr.mxu0 0.0
      %1135 = vmatpush2.msra.mxu0 0.0
      %1136 = vmatprep.subr.mxu0 0.0
      %1137 = vmatpush2.msra.mxu0 0.0
      %1138 = vmatprep.subr.mxu0 0.0
      %1139 = vmatpush2.msra.mxu0 0.0
      %1140 = vmatprep.subr.mxu0 0.0
      %1141 = vmatpush2.msra.mxu0 0.0
      %1142 = vmatprep.subr.mxu0 0.0
      %1143 = vmatpush2.msra.mxu0 0.0
      %1144 = vmatprep.subr.mxu0 0.0
      %1145 = vmatpush2.msra.mxu0 0.0
      %1146 = vmatprep.subr.mxu0 0.0
      %1147 = vmatpush2.msra.mxu0 0.0
      %1148 = vmatprep.subr.mxu0 0.0
      %1149 = vmatpush2.msra.mxu0 0.0
      %1150 = vmatprep.subr.mxu0 0.0
      %1151 = vmatpush2.msra.mxu0 0.0
      %1152 = vmatprep.subr.mxu0 0.0
      %1153 = vmatpush2.msra.mxu0 0.0
      %1154 = vmatprep.subr.mxu0 0.0
      %1155 = vmatpush2.msra.mxu0 0.0
      %1156 = vmatprep.mubr.f32.mxu0 0.0
      %v1157 = vand.u32 %v822, 4294901760
      %v1158 = vsub.f32 %v822, %v1157
      %v1159 = vand.u32 %v1158, 4294901760
      %1160 = vmatmul.mubr.f32.gmra.mxu0 %v1159
      %v1161 = vpop.f32.mrf.mxu0
      %v1162 = vadd.f32 %v1078, %v1161
      %v1163 = vpop.f32.mrf.mxu0
      %v1164 = vadd.f32 %v1080, %v1163
      %1165 = vmatprep.mubr.f32.mxu0 0.0
      %v1166 = vand.u32 %v825, 4294901760
      %v1167 = vsub.f32 %v825, %v1166
      %v1168 = vand.u32 %v1167, 4294901760
      %1169 = vmatmul.mubr.f32.gmra.mxu0 %v1168
      %v1170 = vpop.f32.mrf.mxu0
      %v1171 = vadd.f32 %v1086, %v1170
      %v1172 = vpop.f32.mrf.mxu0
      %v1173 = vadd.f32 %v1088, %v1172
      %1174 = vdwg.mxu0
      %1175 = vmatprep.subr.mxu0 0.0
      %1176 = vmatpush1.msra.mxu0 0.0
      %1177 = vmatprep.subr.mxu0 0.0
      %1178 = vmatpush1.msra.mxu0 0.0
      %1179 = vmatprep.subr.mxu0 0.0
      %1180 = vmatpush1.msra.mxu0 0.0
      %1181 = vmatprep.subr.mxu0 0.0
      %1182 = vmatpush1.msra.mxu0 0.0
      %1183 = vmatprep.subr.mxu0 0.0
      %1184 = vmatpush1.msra.mxu0 0.0
      %1185 = vmatprep.subr.mxu0 0.0
      %1186 = vmatpush1.msra.mxu0 0.0
      %1187 = vmatprep.subr.mxu0 0.0
      %1188 = vmatpush1.msra.mxu0 0.0
      %1189 = vmatprep.subr.mxu0 0.0
      %1190 = vmatpush1.msra.mxu0 0.0
      %1191 = vmatprep.subr.mxu0 0.0
      %1192 = vmatpush1.msra.mxu0 0.0
      %1193 = vmatprep.subr.mxu0 0.0
      %1194 = vmatpush1.msra.mxu0 0.0
      %1195 = vmatprep.subr.mxu0 0.0
      %1196 = vmatpush1.msra.mxu0 0.0
      %1197 = vmatprep.subr.mxu0 0.0
      %1198 = vmatpush1.msra.mxu0 0.0
      %1199 = vmatprep.subr.mxu0 0.0
      %1200 = vmatpush1.msra.mxu0 0.0
      %1201 = vmatprep.subr.mxu0 0.0
      %1202 = vmatpush1.msra.mxu0 0.0
      %1203 = vmatprep.subr.mxu0 0.0
      %1204 = vmatpush1.msra.mxu0 0.0
      %v1205 = vand.u32 %v806, 4294901760
      %v1206 = vsub.f32 %v806, %v1205
      %v1207 = vand.u32 %v1206, 4294901760
      %1208 = vmatprep.subr.mxu0 %v1207
      %v1209 = vand.u32 %v805, 4294901760
      %v1210 = vsub.f32 %v805, %v1209
      %v1211 = vand.u32 %v1210, 4294901760
      %1212 = vmatpush1.msra.mxu0 %v1211
      %1213 = vmatprep.subr.mxu0 0.0
      %1214 = vmatpush2.msra.mxu0 0.0
      %1215 = vmatprep.subr.mxu0 0.0
      %1216 = vmatpush2.msra.mxu0 0.0
      %1217 = vmatprep.subr.mxu0 0.0
      %1218 = vmatpush2.msra.mxu0 0.0
      %1219 = vmatprep.subr.mxu0 0.0
      %1220 = vmatpush2.msra.mxu0 0.0
      %1221 = vmatprep.subr.mxu0 0.0
      %1222 = vmatpush2.msra.mxu0 0.0
      %1223 = vmatprep.subr.mxu0 0.0
      %1224 = vmatpush2.msra.mxu0 0.0
      %1225 = vmatprep.subr.mxu0 0.0
      %1226 = vmatpush2.msra.mxu0 0.0
      %1227 = vmatprep.subr.mxu0 0.0
      %1228 = vmatpush2.msra.mxu0 0.0
      %1229 = vmatprep.subr.mxu0 0.0
      %1230 = vmatpush2.msra.mxu0 0.0
      %1231 = vmatprep.subr.mxu0 0.0
      %1232 = vmatpush2.msra.mxu0 0.0
      %1233 = vmatprep.subr.mxu0 0.0
      %1234 = vmatpush2.msra.mxu0 0.0
      %1235 = vmatprep.subr.mxu0 0.0
      %1236 = vmatpush2.msra.mxu0 0.0
      %1237 = vmatprep.subr.mxu0 0.0
      %1238 = vmatpush2.msra.mxu0 0.0
      %1239 = vmatprep.subr.mxu0 0.0
      %1240 = vmatpush2.msra.mxu0 0.0
      %1241 = vmatprep.subr.mxu0 0.0
      %1242 = vmatpush2.msra.mxu0 0.0
      %1243 = vmatprep.subr.mxu0 0.0
      %1244 = vmatpush2.msra.mxu0 0.0
      %1245 = vmatprep.mubr.f32.mxu0 0.0
      %v1246 = vand.u32 %v822, 4294901760
      %1247 = vmatmul.mubr.f32.gmra.mxu0 %v1246
      %v1248 = vpop.f32.mrf.mxu0
      %v1249 = vadd.f32 %v1162, %v1248
      %v1250 = vpop.f32.mrf.mxu0
      %v1251 = vadd.f32 %v1164, %v1250
      %1252 = vmatprep.mubr.f32.mxu0 0.0
      %v1253 = vand.u32 %v825, 4294901760
      %1254 = vmatmul.mubr.f32.gmra.mxu0 %v1253
      %v1255 = vpop.f32.mrf.mxu0
      %v1256 = vadd.f32 %v1171, %v1255
      %v1257 = vpop.f32.mrf.mxu0
      %v1258 = vadd.f32 %v1173, %v1257
      %1259 = vdwg.mxu0
      %1260 = vmatprep.subr.mxu0 0.0
      %1261 = vmatpush1.msra.mxu0 0.0
      %1262 = vmatprep.subr.mxu0 0.0
      %1263 = vmatpush1.msra.mxu0 0.0
      %1264 = vmatprep.subr.mxu0 0.0
      %1265 = vmatpush1.msra.mxu0 0.0
      %1266 = vmatprep.subr.mxu0 0.0
      %1267 = vmatpush1.msra.mxu0 0.0
      %1268 = vmatprep.subr.mxu0 0.0
      %1269 = vmatpush1.msra.mxu0 0.0
      %1270 = vmatprep.subr.mxu0 0.0
      %1271 = vmatpush1.msra.mxu0 0.0
      %1272 = vmatprep.subr.mxu0 0.0
      %1273 = vmatpush1.msra.mxu0 0.0
      %1274 = vmatprep.subr.mxu0 0.0
      %1275 = vmatpush1.msra.mxu0 0.0
      %1276 = vmatprep.subr.mxu0 0.0
      %1277 = vmatpush1.msra.mxu0 0.0
      %1278 = vmatprep.subr.mxu0 0.0
      %1279 = vmatpush1.msra.mxu0 0.0
      %1280 = vmatprep.subr.mxu0 0.0
      %1281 = vmatpush1.msra.mxu0 0.0
      %1282 = vmatprep.subr.mxu0 0.0
      %1283 = vmatpush1.msra.mxu0 0.0
      %1284 = vmatprep.subr.mxu0 0.0
      %1285 = vmatpush1.msra.mxu0 0.0
      %1286 = vmatprep.subr.mxu0 0.0
      %1287 = vmatpush1.msra.mxu0 0.0
      %1288 = vmatprep.subr.mxu0 0.0
      %1289 = vmatpush1.msra.mxu0 0.0
      %v1290 = vand.u32 %v806, 4294901760
      %1291 = vmatprep.subr.mxu0 %v1290
      %v1292 = vand.u32 %v805, 4294901760
      %1293 = vmatpush1.msra.mxu0 %v1292
      %1294 = vmatprep.subr.mxu0 0.0
      %1295 = vmatpush2.msra.mxu0 0.0
      %1296 = vmatprep.subr.mxu0 0.0
      %1297 = vmatpush2.msra.mxu0 0.0
      %1298 = vmatprep.subr.mxu0 0.0
      %1299 = vmatpush2.msra.mxu0 0.0
      %1300 = vmatprep.subr.mxu0 0.0
      %1301 = vmatpush2.msra.mxu0 0.0
      %1302 = vmatprep.subr.mxu0 0.0
      %1303 = vmatpush2.msra.mxu0 0.0
      %1304 = vmatprep.subr.mxu0 0.0
      %1305 = vmatpush2.msra.mxu0 0.0
      %1306 = vmatprep.subr.mxu0 0.0
      %1307 = vmatpush2.msra.mxu0 0.0
      %1308 = vmatprep.subr.mxu0 0.0
      %1309 = vmatpush2.msra.mxu0 0.0
      %1310 = vmatprep.subr.mxu0 0.0
      %1311 = vmatpush2.msra.mxu0 0.0
      %1312 = vmatprep.subr.mxu0 0.0
      %1313 = vmatpush2.msra.mxu0 0.0
      %1314 = vmatprep.subr.mxu0 0.0
      %1315 = vmatpush2.msra.mxu0 0.0
      %1316 = vmatprep.subr.mxu0 0.0
      %1317 = vmatpush2.msra.mxu0 0.0
      %1318 = vmatprep.subr.mxu0 0.0
      %1319 = vmatpush2.msra.mxu0 0.0
      %1320 = vmatprep.subr.mxu0 0.0
      %1321 = vmatpush2.msra.mxu0 0.0
      %1322 = vmatprep.subr.mxu0 0.0
      %1323 = vmatpush2.msra.mxu0 0.0
      %1324 = vmatprep.subr.mxu0 0.0
      %1325 = vmatpush2.msra.mxu0 0.0
      %1326 = vmatprep.mubr.f32.mxu0 0.0
      %v1327 = vand.u32 %v822, 4294901760
      %1328 = vmatmul.mubr.f32.gmra.mxu0 %v1327
      %v1329 = vpop.f32.mrf.mxu0
      %v1330 = vadd.f32 %v1249, %v1329
      %v1331 = vpop.f32.mrf.mxu0
      %v1332 = vadd.f32 %v1251, %v1331
      %1333 = vmatprep.mubr.f32.mxu0 0.0
      %v1334 = vand.u32 %v825, 4294901760
      %1335 = vmatmul.mubr.f32.gmra.mxu0 %v1334
      %v1336 = vpop.f32.mrf.mxu0
      %v1337 = vadd.f32 %v1256, %v1336
      %v1338 = vpop.f32.mrf.mxu0
      %v1339 = vadd.f32 %v1258, %v1338
      %1340 = vdwg.mxu0
      %v1341 = vld [vmem:[%s315] sm:$0xff]
      %v1342 = vld [vmem:[%s315 + $0x8] sm:$0xff]
      %v1343 = vld [vmem:[%s315 + $0x10] sm:$0xff]
      %v1344 = vld [vmem:[%s315 + $0x18] sm:$0xff]
      %v1345 = vmul.f32 %v1330, %v1341
      %v1346 = vmul.f32 %v1332, %v1342
      %v1347 = vmul.f32 %v1337, %v1343
      %v1348 = vmul.f32 %v1339, %v1344
      %1349 = vst [vmem:[%s325] sm:$0xff] %v1345
      %1350 = vst [vmem:[%s325 + $0x8] sm:$0xff] %v1346
      %1351 = vst [vmem:[%s325 + $0x10] sm:$0xff] %v1347
      %1352 = vst [vmem:[%s325 + $0x18] sm:$0xff] %v1348
      %s1353 = smul.u32 2, %s22
      %p1354 = scmp.lt.s32.totalorder %s21, 1
      %s1355 = scalar_select %p1354, %s21, 1
      %p1356 = scmp.lt.s32.totalorder %s1353, 1
      %s1357 = scalar_select %p1356, %s1353, 1
      %s1358 = smul.addr %s1355, 4
      %s1359 = sadd.s32 %s1357, %s1358
      %s1360 = smul.addr %s1359, 8
      %s1361 = scalar_lea.vmem %s6, %s1360
      // Predicated region
      $region45: #{guided_cost_volume_excitation.1} parent=43 // pred_check
        %p1362 = pneg %p189
      $region46: #{guided_cost_volume_excitation.1} parent=43 // pred_check_branch
        %1364 = sbr.rel (%p1362) target = $region48
      $region47: #{guided_cost_volume_excitation.1} parent=43 // pred_region
        %s1365 = smul.u32 2, %s22
      $region48: #{guided_cost_volume_excitation.1} parent=43 // pred_fallthru
        _
    $region44: #{guided_cost_volume_excitation.1} parent=5 // pred_fallthru
      _
    %p1366 = scmp.le.s32.totalorder 2, %s12
    // Predicated region
    $region49: #{guided_cost_volume_excitation.1} parent=5 // pred_check
      %p1367 = pneg %p1366
    $region50: #{guided_cost_volume_excitation.1} parent=5 // pred_check_branch
      %1369 = sbr.rel (%p1367) target = $region52
    $region51: #{guided_cost_volume_excitation.1} parent=5 // pred_region
      %s1370 = ssub.s32 %s12, 2
      // Predicated region
      $region53: #{guided_cost_volume_excitation.1} parent=51 // pred_check
        %p1371 = pneg %p195
      $region54: #{guided_cost_volume_excitation.1} parent=51 // pred_check_branch
        %1373 = sbr.rel (%p1371) target = $region56
      $region55: #{guided_cost_volume_excitation.1} parent=51 // pred_region
        %s1374 = smul.u32 2, %s24
        %p1375 = scmp.lt.s32.totalorder %s23, 1
        %s1376 = scalar_select %p1375, %s23, 1
        %p1377 = scmp.lt.s32.totalorder %s1374, 1
        %s1378 = scalar_select %p1377, %s1374, 1
        %s1379 = smul.addr %s1376, 4
        %s1380 = sadd.s32 %s1378, %s1379
        %s1381 = smul.addr %s1380, 8
        %s1382 = scalar_lea.vmem %s6, %s1381
      $region56: #{guided_cost_volume_excitation.1} parent=51 // pred_fallthru
        _
    $region52: #{guided_cost_volume_excitation.1} parent=5 // pred_fallthru
      _
  $region6: #{guided_cost_volume_excitation.1} parent=0 // loop_footer
    %s16 = sadd.s32 1, %s12
  $region7: #{guided_cost_volume_excitation.1} parent=0 // loop_footer_branch
    %11 = sbr.rel target = $region3
  $region8: #{guided_cost_volume_excitation.1} parent=0 // loop_exit
    _

</llo_original>
